<compile_context>
chip_gen: v7x
topology: tpu7x:2x2x1
jax: 0.10.0
libtpu: 0.0.40
codegen_flags: <defaults>
</compile_context>

<pallas_src>
import functools

import jax
import jax.numpy as jnp
from jax.experimental import pallas as pl
from jax.experimental.pallas import tpu as pltpu

LANE = 128     # vreg lane width
SUBLANE = 8    # vreg sublane count (f32)
MAX_TB = 1024  # max batch-tile rows


def _round_up(n, m):
    return ((n + m - 1) // m) * m


def _pad2d(a, rows, cols):
    r, c = a.shape
    return jnp.pad(a, ((0, rows - r), (0, cols - c)))


def pad_params(params):
    """One-time padding of the parameters to a lane-dense layout.

    Call once at init; the returned tuple is what the jitted forward consumes.
    """
    w1, b1, w2, b2, w3, b3 = params
    vocab, latent = w1.shape
    out_dim = w3.shape[1]
    latent_p = _round_up(latent, LANE)

    w1p = _pad2d(w1, vocab, latent_p)            # (vocab, 128)
    w2p = _pad2d(w2, latent_p, latent_p)         # (128, 128)
    w3p = _pad2d(w3, latent_p, out_dim)          # (128, out_dim) -- no lane pad on out
    b12 = jnp.concatenate(
        [_pad2d(b1, 1, latent_p), _pad2d(b2, 1, latent_p)], axis=0)  # (2, 128)
    b3p = b3                                     # (1, out_dim)
    return (w1p, b12, w2p, w3p, b3p)


def _mlp_kernel(x_ref, w1_ref, b12_ref, w2_ref, w3_ref, b3_ref, o_ref):
    # fc1 + relu  (x is one-hot, so this matmul is effectively a w1 row gather)
    h = jnp.dot(x_ref[...], w1_ref[...], preferred_element_type=jnp.float32)
    h = jnp.maximum(h + b12_ref[0:1, :], 0.0)
    # fc2 + relu
    h = jnp.dot(h, w2_ref[...], preferred_element_type=jnp.float32)
    h = jnp.maximum(h + b12_ref[1:2, :], 0.0)
    # fc3 (raw logits; the PyTorch forward does NOT apply log_softmax)
    o = jnp.dot(h, w3_ref[...], preferred_element_type=jnp.float32)
    o_ref[...] = (o + b3_ref[...]).astype(o_ref.dtype)


@functools.partial(jax.jit, static_argnums=(2, 3))
def inside_agent_for_action(x, padded_params, n_digits, n_states_per_digit):
    """x: (B, vocab_size) float32 one-hot. Returns (B, n_digits, n_states_per_digit)."""
    w1p, b12, w2p, w3p, b3p = padded_params
    B, vocab = x.shape
    latent_p = w1p.shape[1]
    out_dim = n_digits * n_states_per_digit
    assert w3p.shape[1] == out_dim

    # --- batch tiling: aim for >=2 grid steps (v7x megacore) with tiles up to
    #     1024 rows; small B just rounds up to a sublane multiple.
    if B <= SUBLANE:
        tb = SUBLANE
    else:
        tb = min(_round_up(pl.cdiv(B, 2), SUBLANE), MAX_TB)
    b_pad = _round_up(B, tb)
    nb = b_pad // tb

    # pad x rows only when needed (no-op copy avoided for tile-aligned B)
    xp = x if b_pad == B else jnp.pad(x, ((0, b_pad - B), (0, 0)))

    # constant block index => weight/bias tiles stay resident in VMEM across steps
    const = lambda shape: pl.BlockSpec(shape, lambda i: (0, 0))

    out2d = pl.pallas_call(
        _mlp_kernel,
        out_shape=jax.ShapeDtypeStruct((b_pad, out_dim), jnp.float32),
        grid_spec=pltpu.PrefetchScalarGridSpec(
            num_scalar_prefetch=0,
            grid=(nb,),
            in_specs=[
                pl.BlockSpec((tb, vocab), lambda i: (i, 0)),   # x tile
                const((vocab, latent_p)),                      # fc1 weight
                const((2, latent_p)),                          # fc1/fc2 biases
                const((latent_p, latent_p)),                   # fc2 weight
                const((latent_p, out_dim)),                    # fc3 weight
                const((1, out_dim)),                           # fc3 bias
            ],
            out_specs=pl.BlockSpec((tb, out_dim), lambda i: (i, 0)),
        ),
        compiler_params=pltpu.CompilerParams(
            dimension_semantics=("parallel",),   # both TCs on v7x when nb >= 2
        ),
    )(xp, w1p, b12, w2p, w3p, b3p)

    # strip batch padding; final reshape is pure metadata
    out2d = out2d if b_pad == B else out2d[:B]
    return out2d.reshape(B, n_digits, n_states_per_digit)


def init_params(key, vocab_size, latent, n_digits, n_states_per_digit):
    """Deterministic synthetic parameters (PyTorch-like uniform fan_in init)."""
    out_dim = n_digits * n_states_per_digit
    ks = jax.random.split(key, 6)

    def lin(kw, kb, fan_in, fan_out):
        bound = 1.0 / jnp.sqrt(fan_in)
        w = jax.random.uniform(kw, (fan_in, fan_out), jnp.float32, -bound, bound)
        b = jax.random.uniform(kb, (1, fan_out), jnp.float32, -bound, bound)
        return w, b

    w1, b1 = lin(ks[0], ks[1], vocab_size, latent)
    w2, b2 = lin(ks[2], ks[3], latent, latent)
    w3, b3 = lin(ks[4], ks[5], latent, out_dim)
    return (w1, b1, w2, b2, w3, b3)


def _reference(x, params, n_digits, n_states_per_digit):
    w1, b1, w2, b2, w3, b3 = params
    h = jnp.maximum(x @ w1 + b1, 0.0)
    h = jnp.maximum(h @ w2 + b2, 0.0)
    o = h @ w3 + b3
    return o.reshape(x.shape[0], n_digits, n_states_per_digit)


if __name__ == "__main__":
    n_digits = 4
    n_states_per_digit = 8
    vocab_size = 16
    latent = 64
    batch = 2

    key = jax.random.PRNGKey(0)
    kp, kx = jax.random.split(key)
    params = init_params(kp, vocab_size, latent, n_digits, n_states_per_digit)

    # one-time padding (hoisted out of the per-call forward)
    padded_params = jax.tree_util.tree_map(jax.block_until_ready, pad_params(params))

    # one-hot symbol input, shape (batch, vocab_size)
    idx = jax.random.randint(kx, (batch,), 0, vocab_size)
    x = jax.nn.one_hot(idx, vocab_size, dtype=jnp.float32)

    out = inside_agent_for_action(x, padded_params, n_digits, n_states_per_digit)
    out = jax.block_until_ready(out)

    ref = _reference(x, params, n_digits, n_states_per_digit)
    assert out.shape == (batch, n_digits, n_states_per_digit)
    assert jnp.allclose(out, ref, atol=1e-5, rtol=1e-5)

    print("KERNEL_OK")
</pallas_src>

<mosaic_0001>
module attributes {stable_mosaic.version = 11 : i64} {
  func.func @_mlp_kernel(%arg0: i32, %arg1: memref<8x16xf32, #tpu.memory_space<vmem>>, %arg2: memref<16x128xf32, #tpu.memory_space<vmem>>, %arg3: memref<2x128xf32, #tpu.memory_space<vmem>>, %arg4: memref<128x128xf32, #tpu.memory_space<vmem>>, %arg5: memref<128x32xf32, #tpu.memory_space<vmem>>, %arg6: memref<1x32xf32, #tpu.memory_space<vmem>>, %arg7: memref<8x32xf32, #tpu.memory_space<vmem>>) attributes {dimension_semantics = [#tpu.dimension_semantics<parallel>], iteration_bounds = array<i64: 1>, scalar_prefetch = 0 : i64, scratch_operands = 0 : i64, tpu.core_type = #tpu.core_type<tc>, window_params = [{transform_indices = @transform_0, window_bounds = array<i64: 8, 16>}, {pipeline_mode = #tpu.pipeline_mode<synchronous>, transform_indices = @transform_1, window_bounds = array<i64: 16, 128>}, {pipeline_mode = #tpu.pipeline_mode<synchronous>, transform_indices = @transform_2, window_bounds = array<i64: 2, 128>}, {pipeline_mode = #tpu.pipeline_mode<synchronous>, transform_indices = @transform_3, window_bounds = array<i64: 128, 128>}, {pipeline_mode = #tpu.pipeline_mode<synchronous>, transform_indices = @transform_4, window_bounds = array<i64: 128, 32>}, {pipeline_mode = #tpu.pipeline_mode<synchronous>, transform_indices = @transform_5, window_bounds = array<i64: 1, 32>}, {transform_indices = @transform_6, window_bounds = array<i64: 8, 32>}]} {
    %c0 = arith.constant 0 : index
    %c0_0 = arith.constant 0 : index
    %0 = vector.load %arg1[%c0, %c0_0] : memref<8x16xf32, #tpu.memory_space<vmem>>, vector<8x16xf32>
    %c0_1 = arith.constant 0 : index
    %c0_2 = arith.constant 0 : index
    %1 = vector.load %arg2[%c0_1, %c0_2] : memref<16x128xf32, #tpu.memory_space<vmem>>, vector<16x128xf32>
    %cst = arith.constant dense<0.000000e+00> : vector<8x128xf32>
    %2 = tpu.matmul %0, %1, %cst {dimension_numbers = #tpu.dot_dimension_numbers<[1], [0], [0], [1], [0, 0, 1, 1], [], []>} : vector<8x16xf32>, vector<16x128xf32>, vector<8x128xf32> -> vector<8x128xf32>
    %c0_3 = arith.constant 0 : index
    %c0_4 = arith.constant 0 : index
    %3 = vector.load %arg3[%c0_3, %c0_4] : memref<2x128xf32, #tpu.memory_space<vmem>>, vector<1x128xf32>
    %4 = vector.broadcast %3 : vector<1x128xf32> to vector<8x128xf32>
    %5 = arith.addf %2, %4 : vector<8x128xf32>
    %cst_5 = arith.constant 0.000000e+00 : f32
    %6 = vector.broadcast %cst_5 : f32 to vector<8x128xf32>
    %7 = arith.maximumf %5, %6 : vector<8x128xf32>
    %c0_6 = arith.constant 0 : index
    %c0_7 = arith.constant 0 : index
    %8 = vector.load %arg4[%c0_6, %c0_7] : memref<128x128xf32, #tpu.memory_space<vmem>>, vector<128x128xf32>
    %cst_8 = arith.constant dense<0.000000e+00> : vector<8x128xf32>
    %9 = tpu.matmul %7, %8, %cst_8 {dimension_numbers = #tpu.dot_dimension_numbers<[1], [0], [0], [1], [0, 0, 1, 1], [], []>} : vector<8x128xf32>, vector<128x128xf32>, vector<8x128xf32> -> vector<8x128xf32>
    %c1 = arith.constant 1 : index
    %c0_9 = arith.constant 0 : index
    %10 = vector.load %arg3[%c1, %c0_9] : memref<2x128xf32, #tpu.memory_space<vmem>>, vector<1x128xf32>
    %11 = vector.broadcast %10 : vector<1x128xf32> to vector<8x128xf32>
    %12 = arith.addf %9, %11 : vector<8x128xf32>
    %cst_10 = arith.constant 0.000000e+00 : f32
    %13 = vector.broadcast %cst_10 : f32 to vector<8x128xf32>
    %14 = arith.maximumf %12, %13 : vector<8x128xf32>
    %c0_11 = arith.constant 0 : index
    %c0_12 = arith.constant 0 : index
    %15 = vector.load %arg5[%c0_11, %c0_12] : memref<128x32xf32, #tpu.memory_space<vmem>>, vector<128x32xf32>
    %cst_13 = arith.constant dense<0.000000e+00> : vector<8x32xf32>
    %16 = tpu.matmul %14, %15, %cst_13 {dimension_numbers = #tpu.dot_dimension_numbers<[1], [0], [0], [1], [0, 0, 1, 1], [], []>} : vector<8x128xf32>, vector<128x32xf32>, vector<8x32xf32> -> vector<8x32xf32>
    %c0_14 = arith.constant 0 : index
    %c0_15 = arith.constant 0 : index
    %17 = vector.load %arg6[%c0_14, %c0_15] : memref<1x32xf32, #tpu.memory_space<vmem>>, vector<1x32xf32>
    %18 = vector.broadcast %17 : vector<1x32xf32> to vector<8x32xf32>
    %19 = arith.addf %16, %18 : vector<8x32xf32>
    %c0_16 = arith.constant 0 : index
    %c0_17 = arith.constant 0 : index
    %20 = vector.load %arg7[%c0_16, %c0_17] : memref<8x32xf32, #tpu.memory_space<vmem>>, vector<8x32xf32>
    tpu.vector_store %arg7[%c0_16, %c0_17], %19 {strides = array<i32>} : memref<8x32xf32, #tpu.memory_space<vmem>>, vector<8x32xf32>,
    return
  }
  func.func @transform_0(%arg0: i32) -> (i32, i32) {
    %c0_i32 = arith.constant 0 : i32
    %c0_i32_0 = arith.constant 0 : i32
    return %arg0, %c0_i32 : i32, i32
  }
  func.func @transform_1(%arg0: i32) -> (i32, i32) {
    %c0_i32 = arith.constant 0 : i32
    %c0_i32_0 = arith.constant 0 : i32
    %c0_i32_1 = arith.constant 0 : i32
    return %c0_i32, %c0_i32_0 : i32, i32
  }
  func.func @transform_2(%arg0: i32) -> (i32, i32) {
    %c0_i32 = arith.constant 0 : i32
    %c0_i32_0 = arith.constant 0 : i32
    %c0_i32_1 = arith.constant 0 : i32
    return %c0_i32, %c0_i32_0 : i32, i32
  }
  func.func @transform_3(%arg0: i32) -> (i32, i32) {
    %c0_i32 = arith.constant 0 : i32
    %c0_i32_0 = arith.constant 0 : i32
    %c0_i32_1 = arith.constant 0 : i32
    return %c0_i32, %c0_i32_0 : i32, i32
  }
  func.func @transform_4(%arg0: i32) -> (i32, i32) {
    %c0_i32 = arith.constant 0 : i32
    %c0_i32_0 = arith.constant 0 : i32
    %c0_i32_1 = arith.constant 0 : i32
    return %c0_i32, %c0_i32_0 : i32, i32
  }
  func.func @transform_5(%arg0: i32) -> (i32, i32) {
    %c0_i32 = arith.constant 0 : i32
    %c0_i32_0 = arith.constant 0 : i32
    %c0_i32_1 = arith.constant 0 : i32
    return %c0_i32, %c0_i32_0 : i32, i32
  }
  func.func @transform_6(%arg0: i32) -> (i32, i32) {
    %c0_i32 = arith.constant 0 : i32
    %c0_i32_0 = arith.constant 0 : i32
    return %arg0, %c0_i32 : i32, i32
  }
}

</mosaic_0001>

<llo_original>
// kernel: inside_agent_for_action.1
$region0: #{inside_agent_for_action.1}
  #allocation0 [shape = 'u32[]', space=smem, size = 0x4, offset = 0x4, fixed_abs, tag = 'smem constant byte address 0x4 - core index']
  #allocation1 [shape = 'u32[144,128]{1,0:T(1,128)}', space=vmem, size = 0x12000, scoped, tag = 'internal scratch']
  %s0 = inlined_call_operand.vmem [shape: f32[8,16], index: 0, kind: input, shape index: {}]
  %s1 = inlined_call_operand.vmem [shape: f32[16,128], index: 1, kind: input, shape index: {}]
  %s2 = inlined_call_operand.vmem [shape: f32[2,128], index: 2, kind: input, shape index: {}]
  %s3 = inlined_call_operand.vmem [shape: f32[128,128], index: 3, kind: input, shape index: {}]
  %s4 = inlined_call_operand.vmem [shape: f32[128,32], index: 4, kind: input, shape index: {}]
  %s5 = inlined_call_operand.vmem [shape: f32[1,32], index: 5, kind: input, shape index: {}]
  %s6 = inlined_call_operand.vmem [shape: f32[8,32], index: 6, kind: output, shape index: {}]
  %s7 = sld [smem:[#allocation0]]
  $region34: #{inside_agent_for_action.1} parent=0
    _
  %s9 = ssub.s32 1, %s7
  %s10 = scalar_select 0, %s9, %s7
  // Predicated region
  $region2: #{inside_agent_for_action.1} parent=0 // pred_check
    _
  $region3: #{inside_agent_for_action.1} parent=0 // pred_check_branch
    %12 = sbr.rel (0) target = $region5
  $region4: #{inside_agent_for_action.1} parent=0 // pred_region
    _
  $region5: #{inside_agent_for_action.1} parent=0 // pred_fallthru
    _
  // Predicated region
  $region6: #{inside_agent_for_action.1} parent=0 // pred_check
    _
  $region7: #{inside_agent_for_action.1} parent=0 // pred_check_branch
    %14 = sbr.rel (0) target = $region9
  $region8: #{inside_agent_for_action.1} parent=0 // pred_region
    _
  $region9: #{inside_agent_for_action.1} parent=0 // pred_fallthru
    _
  // Predicated region
  $region10: #{inside_agent_for_action.1} parent=0 // pred_check
    _
  $region11: #{inside_agent_for_action.1} parent=0 // pred_check_branch
    %16 = sbr.rel (0) target = $region13
  $region12: #{inside_agent_for_action.1} parent=0 // pred_region
    _
  $region13: #{inside_agent_for_action.1} parent=0 // pred_fallthru
    _
  // Predicated region
  $region14: #{inside_agent_for_action.1} parent=0 // pred_check
    _
  $region15: #{inside_agent_for_action.1} parent=0 // pred_check_branch
    %18 = sbr.rel (0) target = $region17
  $region16: #{inside_agent_for_action.1} parent=0 // pred_region
    _
  $region17: #{inside_agent_for_action.1} parent=0 // pred_fallthru
    _
  // Predicated region
  $region18: #{inside_agent_for_action.1} parent=0 // pred_check
    _
  $region19: #{inside_agent_for_action.1} parent=0 // pred_check_branch
    %20 = sbr.rel (0) target = $region21
  $region20: #{inside_agent_for_action.1} parent=0 // pred_region
    _
  $region21: #{inside_agent_for_action.1} parent=0 // pred_fallthru
    _
  // Predicated region
  $region22: #{inside_agent_for_action.1} parent=0 // pred_check
    _
  $region23: #{inside_agent_for_action.1} parent=0 // pred_check_branch
    %22 = sbr.rel (0) target = $region25
  $region24: #{inside_agent_for_action.1} parent=0 // pred_region
    _
  $region25: #{inside_agent_for_action.1} parent=0 // pred_fallthru
    _
  %v23 = vld [vmem:[%s0] sm:$0xff]
  %v24 = vld [vmem:[%s1] sm:$0xff]
  %v25 = vld [vmem:[%s1 + $0x8] sm:$0xff]
  %v26 = vld [vmem:[%s2] sm:$0x1]
  %v27 = vlaneseq
  %v28 = vshrl.u32 %v27, 7
  %v29 = vsub.s32 0, %v28
  %v30 = vrot.slane %v26, %v29
  %vm31 = vcmask 130048
  %v33 = vsel %vm31, %v23, 0
  %35 = vmatprep.subr.mxu0 0.0
  %36 = vmatpush1.msra.mxu0 %v24
  %37 = vmatprep.subr.mxu0 0.0
  %38 = vmatpush1.msra.mxu0 %v25
  %39 = vmatprep.subr.mxu0 0.0
  %40 = vmatpush1.msra.mxu0 0.0
  %41 = vmatprep.subr.mxu0 0.0
  %42 = vmatpush1.msra.mxu0 0.0
  %43 = vmatprep.subr.mxu0 0.0
  %44 = vmatpush1.msra.mxu0 0.0
  %45 = vmatprep.subr.mxu0 0.0
  %46 = vmatpush1.msra.mxu0 0.0
  %47 = vmatprep.subr.mxu0 0.0
  %48 = vmatpush1.msra.mxu0 0.0
  %49 = vmatprep.subr.mxu0 0.0
  %50 = vmatpush1.msra.mxu0 0.0
  %51 = vmatprep.subr.mxu0 0.0
  %52 = vmatpush1.msra.mxu0 0.0
  %53 = vmatprep.subr.mxu0 0.0
  %54 = vmatpush1.msra.mxu0 0.0
  %55 = vmatprep.subr.mxu0 0.0
  %56 = vmatpush1.msra.mxu0 0.0
  %57 = vmatprep.subr.mxu0 0.0
  %58 = vmatpush1.msra.mxu0 0.0
  %59 = vmatprep.subr.mxu0 0.0
  %60 = vmatpush1.msra.mxu0 0.0
  %61 = vmatprep.subr.mxu0 0.0
  %62 = vmatpush1.msra.mxu0 0.0
  %63 = vmatprep.subr.mxu0 0.0
  %64 = vmatpush1.msra.mxu0 0.0
  %65 = vmatprep.subr.mxu0 0.0
  %66 = vmatpush1.msra.mxu0 0.0
  %67 = vmatprep.subr.mxu0 0.0
  %68 = vmatpush1.msra.mxu0 0.0
  %69 = vmatprep.subr.mxu0 0.0
  %70 = vmatpush1.msra.mxu0 0.0
  %71 = vmatprep.subr.mxu0 0.0
  %72 = vmatpush1.msra.mxu0 0.0
  %73 = vmatprep.subr.mxu0 0.0
  %74 = vmatpush1.msra.mxu0 0.0
  %75 = vmatprep.subr.mxu0 0.0
  %76 = vmatpush1.msra.mxu0 0.0
  %77 = vmatprep.subr.mxu0 0.0
  %78 = vmatpush1.msra.mxu0 0.0
  %79 = vmatprep.subr.mxu0 0.0
  %80 = vmatpush1.msra.mxu0 0.0
  %81 = vmatprep.subr.mxu0 0.0
  %82 = vmatpush1.msra.mxu0 0.0
  %83 = vmatprep.subr.mxu0 0.0
  %84 = vmatpush1.msra.mxu0 0.0
  %85 = vmatprep.subr.mxu0 0.0
  %86 = vmatpush1.msra.mxu0 0.0
  %87 = vmatprep.subr.mxu0 0.0
  %88 = vmatpush1.msra.mxu0 0.0
  %89 = vmatprep.subr.mxu0 0.0
  %90 = vmatpush1.msra.mxu0 0.0
  %91 = vmatprep.subr.mxu0 0.0
  %92 = vmatpush1.msra.mxu0 0.0
  %93 = vmatprep.subr.mxu0 0.0
  %94 = vmatpush1.msra.mxu0 0.0
  %95 = vmatprep.subr.mxu0 0.0
  %96 = vmatpush1.msra.mxu0 0.0
  %97 = vmatprep.subr.mxu0 0.0
  %98 = vmatpush1.msra.mxu0 0.0
  %99 = vmatprep.mubr.f32.mxu0 0.0
  %100 = vmatmul.mubr.f32.gmra.mrb[0].mxu0 %v33
  %v101 = vpop.f32.mrb[0].mxu0
  %v102 = vadd.f32 %v30, %v101
  %v103 = vpop.f32.mrb[0].mxu0
  %104 = vdwg.mxu0
  %v105 = vmax.f32 %v102, 0.0
  %v106 = vld [vmem:[%s3] sm:$0xff]
  %v107 = vld [vmem:[%s3 + $0x8] sm:$0xff]
  %v108 = vld [vmem:[%s3 + $0x10] sm:$0xff]
  %v109 = vld [vmem:[%s3 + $0x18] sm:$0xff]
  %v110 = vld [vmem:[%s3 + $0x20] sm:$0xff]
  %v111 = vld [vmem:[%s3 + $0x28] sm:$0xff]
  %v112 = vld [vmem:[%s3 + $0x30] sm:$0xff]
  %v113 = vld [vmem:[%s3 + $0x38] sm:$0xff]
  %v114 = vld [vmem:[%s3 + $0x40] sm:$0xff]
  %v115 = vld [vmem:[%s3 + $0x48] sm:$0xff]
  %v116 = vld [vmem:[%s3 + $0x50] sm:$0xff]
  %v117 = vld [vmem:[%s3 + $0x58] sm:$0xff]
  %v118 = vld [vmem:[%s3 + $0x60] sm:$0xff]
  %v119 = vld [vmem:[%s3 + $0x68] sm:$0xff]
  %v120 = vld [vmem:[%s3 + $0x70] sm:$0xff]
  %v121 = vld [vmem:[%s3 + $0x78] sm:$0xff]
  %v122 = vld [vmem:[%s2 + $0x1] sm:$0x1]
  %v123 = vlaneseq
  %v124 = vshrl.u32 %v123, 7
  %v125 = vsub.s32 0, %v124
  %v126 = vrot.slane %v122, %v125
  %127 = vmatprep.subr.mxu0 0.0
  %128 = vmatpush1.msra.mxu0 %v106
  %129 = vmatprep.subr.mxu0 0.0
  %130 = vmatpush1.msra.mxu0 %v107
  %131 = vmatprep.subr.mxu0 0.0
  %132 = vmatpush1.msra.mxu0 %v108
  %133 = vmatprep.subr.mxu0 0.0
  %134 = vmatpush1.msra.mxu0 %v109
  %135 = vmatprep.subr.mxu0 0.0
  %136 = vmatpush1.msra.mxu0 %v110
  %137 = vmatprep.subr.mxu0 0.0
  %138 = vmatpush1.msra.mxu0 %v111
  %139 = vmatprep.subr.mxu0 0.0
  %140 = vmatpush1.msra.mxu0 %v112
  %141 = vmatprep.subr.mxu0 0.0
  %142 = vmatpush1.msra.mxu0 %v113
  %143 = vmatprep.subr.mxu0 0.0
  %144 = vmatpush1.msra.mxu0 %v114
  %145 = vmatprep.subr.mxu0 0.0
  %146 = vmatpush1.msra.mxu0 %v115
  %147 = vmatprep.subr.mxu0 0.0
  %148 = vmatpush1.msra.mxu0 %v116
  %149 = vmatprep.subr.mxu0 0.0
  %150 = vmatpush1.msra.mxu0 %v117
  %151 = vmatprep.subr.mxu0 0.0
  %152 = vmatpush1.msra.mxu0 %v118
  %153 = vmatprep.subr.mxu0 0.0
  %154 = vmatpush1.msra.mxu0 %v119
  %155 = vmatprep.subr.mxu0 0.0
  %156 = vmatpush1.msra.mxu0 %v120
  %157 = vmatprep.subr.mxu0 0.0
  %158 = vmatpush1.msra.mxu0 %v121
  %159 = vmatprep.subr.mxu0 0.0
  %160 = vmatpush1.msra.mxu0 0.0
  %161 = vmatprep.subr.mxu0 0.0
  %162 = vmatpush1.msra.mxu0 0.0
  %163 = vmatprep.subr.mxu0 0.0
  %164 = vmatpush1.msra.mxu0 0.0
  %165 = vmatprep.subr.mxu0 0.0
  %166 = vmatpush1.msra.mxu0 0.0
  %167 = vmatprep.subr.mxu0 0.0
  %168 = vmatpush1.msra.mxu0 0.0
  %169 = vmatprep.subr.mxu0 0.0
  %170 = vmatpush1.msra.mxu0 0.0
  %171 = vmatprep.subr.mxu0 0.0
  %172 = vmatpush1.msra.mxu0 0.0
  %173 = vmatprep.subr.mxu0 0.0
  %174 = vmatpush1.msra.mxu0 0.0
  %175 = vmatprep.subr.mxu0 0.0
  %176 = vmatpush1.msra.mxu0 0.0
  %177 = vmatprep.subr.mxu0 0.0
  %178 = vmatpush1.msra.mxu0 0.0
  %179 = vmatprep.subr.mxu0 0.0
  %180 = vmatpush1.msra.mxu0 0.0
  %181 = vmatprep.subr.mxu0 0.0
  %182 = vmatpush1.msra.mxu0 0.0
  %183 = vmatprep.subr.mxu0 0.0
  %184 = vmatpush1.msra.mxu0 0.0
  %185 = vmatprep.subr.mxu0 0.0
  %186 = vmatpush1.msra.mxu0 0.0
  %187 = vmatprep.subr.mxu0 0.0
  %188 = vmatpush1.msra.mxu0 0.0
  %189 = vmatprep.subr.mxu0 0.0
  %190 = vmatpush1.msra.mxu0 0.0
  %191 = vmatprep.mubr.f32.mxu0 0.0
  %192 = vmatmul.mubr.f32.gmra.mrb[0].mxu0 %v105
  %v193 = vpop.f32.mrb[0].mxu0
  %v194 = vadd.f32 %v126, %v193
  %v195 = vpop.f32.mrb[0].mxu0
  %196 = vdwg.mxu0
  %v197 = vmax.f32 %v194, 0.0
  %v198 = vld [vmem:[%s4] sm:$0xff]
  %v199 = vld [vmem:[%s4 + $0x8] sm:$0xff]
  %v200 = vld [vmem:[%s4 + $0x10] sm:$0xff]
  %v201 = vld [vmem:[%s4 + $0x18] sm:$0xff]
  %v202 = vld [vmem:[%s4 + $0x20] sm:$0xff]
  %v203 = vld [vmem:[%s4 + $0x28] sm:$0xff]
  %v204 = vld [vmem:[%s4 + $0x30] sm:$0xff]
  %v205 = vld [vmem:[%s4 + $0x38] sm:$0xff]
  %v206 = vld [vmem:[%s4 + $0x40] sm:$0xff]
  %v207 = vld [vmem:[%s4 + $0x48] sm:$0xff]
  %v208 = vld [vmem:[%s4 + $0x50] sm:$0xff]
  %v209 = vld [vmem:[%s4 + $0x58] sm:$0xff]
  %v210 = vld [vmem:[%s4 + $0x60] sm:$0xff]
  %v211 = vld [vmem:[%s4 + $0x68] sm:$0xff]
  %v212 = vld [vmem:[%s4 + $0x70] sm:$0xff]
  %v213 = vld [vmem:[%s4 + $0x78] sm:$0xff]
  %v214 = vld [vmem:[%s5] sm:$0x1]
  %v216 = vlaneseq
  %v217 = vshrl.u32 %v216, 7
  %v218 = vsub.s32 0, %v217
  %v219 = vrot.slane %v214, %v218
  %221 = vmatprep.subr.mxu0 0.0
  %222 = vmatpush1.msra.mxu0 %v198
  %223 = vmatprep.subr.mxu0 0.0
  %224 = vmatpush1.msra.mxu0 %v199
  %225 = vmatprep.subr.mxu0 0.0
  %226 = vmatpush1.msra.mxu0 %v200
  %227 = vmatprep.subr.mxu0 0.0
  %228 = vmatpush1.msra.mxu0 %v201
  %229 = vmatprep.subr.mxu0 0.0
  %230 = vmatpush1.msra.mxu0 %v202
  %231 = vmatprep.subr.mxu0 0.0
  %232 = vmatpush1.msra.mxu0 %v203
  %233 = vmatprep.subr.mxu0 0.0
  %234 = vmatpush1.msra.mxu0 %v204
  %235 = vmatprep.subr.mxu0 0.0
  %236 = vmatpush1.msra.mxu0 %v205
  %237 = vmatprep.subr.mxu0 0.0
  %238 = vmatpush1.msra.mxu0 %v206
  %239 = vmatprep.subr.mxu0 0.0
  %240 = vmatpush1.msra.mxu0 %v207
  %241 = vmatprep.subr.mxu0 0.0
  %242 = vmatpush1.msra.mxu0 %v208
  %243 = vmatprep.subr.mxu0 0.0
  %244 = vmatpush1.msra.mxu0 %v209
  %245 = vmatprep.subr.mxu0 0.0
  %246 = vmatpush1.msra.mxu0 %v210
  %247 = vmatprep.subr.mxu0 0.0
  %248 = vmatpush1.msra.mxu0 %v211
  %249 = vmatprep.subr.mxu0 0.0
  %250 = vmatpush1.msra.mxu0 %v212
  %251 = vmatprep.subr.mxu0 0.0
  %252 = vmatpush1.msra.mxu0 %v213
  %253 = vmatprep.subr.mxu0 0.0
  %254 = vmatpush1.msra.mxu0 0.0
  %255 = vmatprep.subr.mxu0 0.0
  %256 = vmatpush1.msra.mxu0 0.0
  %257 = vmatprep.subr.mxu0 0.0
  %258 = vmatpush1.msra.mxu0 0.0
  %259 = vmatprep.subr.mxu0 0.0
  %260 = vmatpush1.msra.mxu0 0.0
  %261 = vmatprep.subr.mxu0 0.0
  %262 = vmatpush1.msra.mxu0 0.0
  %263 = vmatprep.subr.mxu0 0.0
  %264 = vmatpush1.msra.mxu0 0.0
  %265 = vmatprep.subr.mxu0 0.0
  %266 = vmatpush1.msra.mxu0 0.0
  %267 = vmatprep.subr.mxu0 0.0
  %268 = vmatpush1.msra.mxu0 0.0
  %269 = vmatprep.subr.mxu0 0.0
  %270 = vmatpush1.msra.mxu0 0.0
  %271 = vmatprep.subr.mxu0 0.0
  %272 = vmatpush1.msra.mxu0 0.0
  %273 = vmatprep.subr.mxu0 0.0
  %274 = vmatpush1.msra.mxu0 0.0
  %275 = vmatprep.subr.mxu0 0.0
  %276 = vmatpush1.msra.mxu0 0.0
  %277 = vmatprep.subr.mxu0 0.0
  %278 = vmatpush1.msra.mxu0 0.0
  %279 = vmatprep.subr.mxu0 0.0
  %280 = vmatpush1.msra.mxu0 0.0
  %281 = vmatprep.subr.mxu0 0.0
  %282 = vmatpush1.msra.mxu0 0.0
  %283 = vmatprep.subr.mxu0 0.0
  %284 = vmatpush1.msra.mxu0 0.0
  %285 = vmatprep.mubr.f32.mxu0 0.0
  %286 = vmatmul.mubr.f32.gmra.mrb[0].mxu0 %v197
  %v287 = vpop.f32.mrb[0].mxu0
  %v288 = vadd.f32 %v219, %v287
  %v289 = vpop.f32.mrb[0].mxu0
  %290 = vdwg.mxu0
  %vm291 = vcmask 261120
  %292 = vst.msk [vmem:[%s6] sm:$0xff] %vm291, %v288
  // Predicated region
  $region26: #{inside_agent_for_action.1} parent=0 // pred_check
    _
  $region27: #{inside_agent_for_action.1} parent=0 // pred_check_branch
    %294 = sbr.rel (0) target = $region29
  $region28: #{inside_agent_for_action.1} parent=0 // pred_region
    _
  $region29: #{inside_agent_for_action.1} parent=0 // pred_fallthru
    _
  // Predicated region
  $region30: #{inside_agent_for_action.1} parent=0 // pred_check
    _
  $region31: #{inside_agent_for_action.1} parent=0 // pred_check_branch
    %296 = sbr.rel (0) target = $region33
  $region32: #{inside_agent_for_action.1} parent=0 // pred_region
    _
  $region33: #{inside_agent_for_action.1} parent=0 // pred_fallthru
    _

</llo_original>
